<compile_context>
chip_gen: v7x
topology: tpu7x:2x2x1
jax: 0.10.0
libtpu: 0.0.40
codegen_flags: <defaults>
</compile_context>

<pallas_src>
import math
from itertools import product

import jax
import jax.numpy as jnp
from jax import lax
from jax.experimental import pallas as pl
from jax.experimental.pallas import tpu as pltpu
from jax.scipy import ndimage as jndimage


# ----------------------------------------------------------------------------
# small helpers
# ----------------------------------------------------------------------------
def _triple(v):
    if isinstance(v, (tuple, list)):
        assert len(v) == 3
        return tuple(int(i) for i in v)
    return (int(v),) * 3


def _round_up(v, m):
    return (v + m - 1) // m * m


def _out_spatial(in_sp, ksize, stride, padding, dilation):
    return tuple(
        (s + 2 * p - (d * (k - 1) + 1)) // st + 1
        for s, k, st, p, d in zip(in_sp, ksize, stride, padding, dilation))


# ----------------------------------------------------------------------------
# Pallas kernel: grouped im2col GEMM + bias
# ----------------------------------------------------------------------------
def _grouped_gemm_bias_kernel(cols_ref, w_ref, b_ref, o_ref):
    # cols_ref: (1, 1, KC, tile_p) bf16     w_ref: (1, Cout_g, KC) bf16
    # b_ref:    (1, Cout_g, 1)     f32      o_ref: (1, 1, Cout_g, tile_p) out_dtype
    cols = cols_ref[0, 0]                                     # (KC, tile_p)
    w = w_ref[0]                                              # (Cout_g, KC)
    # Plain A@B: no transpose/relayout of the streamed cols tile, f32 MXU acc.
    acc = jnp.dot(w, cols, preferred_element_type=jnp.float32)
    o_ref[0, 0] = (acc + b_ref[0]).astype(o_ref.dtype)


def _vmem_capacity_bytes():
    """Physical VMEM per core; conservative (v7x) fallback if the query fails."""
    try:
        info = pltpu.get_tpu_info()
        cap = int(getattr(info, "vmem_capacity_bytes", 0) or 0)
        if cap > 0:
            return cap
    except Exception:
        pass
    return 64 << 20


def _block_bytes(tile_p, kc, cout_g, cols_item, out_item, w_item):
    # double-buffered cols + out blocks, plus the resident weight/bias blocks
    return (2 * tile_p * (kc * cols_item + cout_g * out_item)
            + 2 * cout_g * (kc * w_item + 4))


def _choose_tile_p(P, kc, cout_g, n_batch, n_groups, budget_bytes,
                   cols_item, out_item, w_item, max_tile=2048):
    """Largest 128-multiple position tile fitting the VMEM budget."""
    if P <= 128:
        return P
    p_cap = P if P % 128 == 0 else max(128, (P // 128) * 128)
    tile = 128
    while (tile * 2 <= min(p_cap, max_tile)
           and _block_bytes(tile * 2, kc, cout_g, cols_item, out_item, w_item)
           <= budget_bytes):
        tile *= 2
    # v7x shards the parallel grid axes over 2 TensorCores: avoid a 1-step grid.
    if n_batch * n_groups == 1 and tile >= P and P >= 256:
        tile = min(p_cap, max(128, _round_up(pl.cdiv(P, 2), 128)))
    return tile


def _grouped_matmul_bias(cols, wmat, bias3, out_dtype):
    # cols: (N, G, KC, P)  wmat: (G, Cout_g, KC)  bias3: (G, Cout_g, 1)
    N, G, KC, P = cols.shape
    Cout_g = wmat.shape[1]
    cols_item = cols.dtype.itemsize
    w_item = wmat.dtype.itemsize
    out_item = jnp.dtype(out_dtype).itemsize

    cap = _vmem_capacity_bytes()
    pref_limit = int(min(0.40 * cap, 40 << 20))   # ~25 MiB on v7x, 40 MiB on v5e/v6e
    tile_budget = int(0.75 * pref_limit)          # headroom for Mosaic scratch
    tile_p = _choose_tile_p(P, KC, Cout_g, N, G, tile_budget,
                            cols_item, out_item, w_item)
    blk = _block_bytes(tile_p, KC, Cout_g, cols_item, out_item, w_item)
    vmem_limit = int(min(max(pref_limit, int(1.3 * blk)), int(0.9 * cap)))

    return pl.pallas_call(
        _grouped_gemm_bias_kernel,
        out_shape=jax.ShapeDtypeStruct((N, G, Cout_g, P), out_dtype),
        grid_spec=pltpu.PrefetchScalarGridSpec(
            num_scalar_prefetch=0,
            # g outermost -> weight/bias block index changes only G times.
            grid=(G, N, pl.cdiv(P, tile_p)),
            in_specs=[
                pl.BlockSpec((1, 1, KC, tile_p), lambda g, n, p: (n, g, 0, p)),
                pl.BlockSpec((1, Cout_g, KC), lambda g, n, p: (g, 0, 0)),
                pl.BlockSpec((1, Cout_g, 1), lambda g, n, p: (g, 0, 0)),
            ],
            out_specs=pl.BlockSpec((1, 1, Cout_g, tile_p),
                                   lambda g, n, p: (n, g, 0, p)),
        ),
        compiler_params=pltpu.CompilerParams(
            dimension_semantics=("parallel", "parallel", "parallel"),
            vmem_limit_bytes=vmem_limit),
    )(cols, wmat, bias3)


# ----------------------------------------------------------------------------
# JAX glue: coordinates + deformable im2col (trilinear corner combine)
# ----------------------------------------------------------------------------
def _decode_coords(offset, out_spatial, ksize, stride, padding, dilation, dg):
    """Absolute fractional sampling coordinates per output position / tap.
    Offset channels are ordered ((g*K + k)*3 + comp), comp = (dt, dh, dw) --
    exactly the layout DeformConv_d.forward builds.  Returns (ct, ch, cw),
    each (N, dg, K, P) float32."""
    N = offset.shape[0]
    To, Ho, Wo = out_spatial
    KT, KH, KW = ksize
    st, sh, sw = stride
    pt, ph, pw = padding
    dt, dh, dw = dilation
    K = KT * KH * KW
    P = To * Ho * Wo
    off = offset.reshape(N, dg, K, 3, P).astype(jnp.float32)

    tg, hg, wg = jnp.meshgrid(jnp.arange(To), jnp.arange(Ho), jnp.arange(Wo),
                              indexing="ij")
    base_t = (tg * st - pt).reshape(P).astype(jnp.float32)
    base_h = (hg * sh - ph).reshape(P).astype(jnp.float32)
    base_w = (wg * sw - pw).reshape(P).astype(jnp.float32)

    kt, kh, kw = jnp.meshgrid(jnp.arange(KT), jnp.arange(KH), jnp.arange(KW),
                              indexing="ij")
    tap_t = (kt * dt).reshape(K).astype(jnp.float32)
    tap_h = (kh * dh).reshape(K).astype(jnp.float32)
    tap_w = (kw * dw).reshape(K).astype(jnp.float32)

    ct = base_t[None, None, None, :] + tap_t[None, None, :, None] + off[:, :, :, 0, :]
    ch = base_h[None, None, None, :] + tap_h[None, None, :, None] + off[:, :, :, 1, :]
    cw = base_w[None, None, None, :] + tap_w[None, None, :, None] + off[:, :, :, 2, :]
    return ct, ch, cw


def _build_cols(x, offset, ksize, stride, padding, dilation, groups, dg,
                compute_dtype):
    """Deformable im2col in the GEMM-ready layout.

    Returns cols (N, G, Cin_g*K, P) in compute_dtype, with the contraction
    index ordered channel-major / tap-minor (c*K + k), which matches the
    natural flattening of the conv weight -- so neither cols nor weight needs a
    transpose and the Pallas kernel is a plain matmul."""
    N, C, T, H, W = x.shape
    KT, KH, KW = ksize
    K = KT * KH * KW
    To, Ho, Wo = _out_spatial((T, H, W), ksize, stride, padding, dilation)
    P = To * Ho * Wo
    Cdg = C // dg
    Cin_g = C // groups

    # (N, dg, K, P): already tap-major / position-minor, no transposes needed.
    ct, ch, cw = _decode_coords(offset, (To, Ho, Wo), ksize, stride, padding,
                                dilation, dg)
    t0 = jnp.floor(ct); h0 = jnp.floor(ch); w0 = jnp.floor(cw)
    ft = ct - t0; fh = ch - h0; fw = cw - w0

    # channels-first slabs per deformable group: pure reshape of x (no transpose).
    x_cf = x.reshape(N, dg, Cdg, T * H * W).astype(jnp.float32)
    gather = jax.vmap(jax.vmap(
        lambda xs, it: jnp.take(xs, it, axis=1, mode="clip")))

    # TODO(synk): no clean in-kernel dynamic gather on TPU Pallas; the 8-corner
    # gather stays in XLA.  Only the channel-invariant trilinear weights are
    # applied, so nothing wider than the im2col matrix is materialized.
    acc = jnp.zeros((N, dg, Cdg, K, P), jnp.float32)
    for ctn, chn, cwn in product((0, 1), repeat=3):
        ti = t0 + ctn; hi = h0 + chn; wi = w0 + cwn
        valid = ((ti >= 0) & (ti < T) & (hi >= 0) & (hi < H)
                 & (wi >= 0) & (wi < W))
        wgt = (((1.0 - ft) if ctn == 0 else ft)
               * ((1.0 - fh) if chn == 0 else fh)
               * ((1.0 - fw) if cwn == 0 else fw))
        wgt = wgt * valid.astype(jnp.float32)                     # (N, dg, K, P)
        tic = jnp.clip(ti, 0, T - 1).astype(jnp.int32)
        hic = jnp.clip(hi, 0, H - 1).astype(jnp.int32)
        wic = jnp.clip(wi, 0, W - 1).astype(jnp.int32)
        idx = (tic * H + hic) * W + wic                           # (N, dg, K, P)
        v = gather(x_cf, idx)                                     # (N, dg, Cdg, K, P)
        acc = acc + wgt[:, :, None, :, :] * v

    # Cast fuses with the final accumulate; everything below is a pure reshape
    # (the (dg, Cdg) and (G, Cin_g) factorizations share the same channel axis).
    cols = acc.astype(compute_dtype)
    cols = cols.reshape(N, C, K, P).reshape(N, groups, Cin_g, K, P)
    cols = cols.reshape(N, groups, Cin_g * K, P)
    return cols, (To, Ho, Wo)


def deform_conv3d(x, offset, weight, bias, stride, padding, dilation,
                  groups, deformable_groups, compute_dtype=jnp.bfloat16):
    N, C, T, H, W = x.shape
    Cout, Cin_g, KT, KH, KW = weight.shape
    G = groups
    Cout_g = Cout // G
    K = KT * KH * KW
    stride, padding, dilation = _triple(stride), _triple(padding), _triple(dilation)

    cols, (To, Ho, Wo) = _build_cols(x, offset, (KT, KH, KW), stride, padding,
                                     dilation, G, deformable_groups,
                                     compute_dtype)                 # (N, G, KC, P)
    # weight -> (G, Cout_g, Cin_g*K): pure reshape, same KC ordering as cols.
    wmat = weight.reshape(G, Cout_g, Cin_g, K).reshape(G, Cout_g, Cin_g * K)
    wmat = wmat.astype(compute_dtype)
    bias3 = bias.reshape(G, Cout_g, 1).astype(jnp.float32)

    out = _grouped_matmul_bias(cols, wmat, bias3, x.dtype)          # (N, G, Cout_g, P)
    return out.reshape(N, Cout, To, Ho, Wo)


# ----------------------------------------------------------------------------
# DeformConv_d: reduced-offset expansion + module
# ----------------------------------------------------------------------------
def _expand_offset(temp, dimension, deformable_groups, K):
    """Mirror DeformConv_d.forward: expand the reduced offset tensor `temp`
    (channels only for the axes named in `dimension`, in T,H,W order) into the
    full (N, dg*K*3, To, Ho, Wo) offset tensor, zero-filling frozen axes."""
    present = [c in dimension for c in "THW"]
    L = sum(present)
    n = temp.shape[0]
    sp = tuple(temp.shape[2:])
    dgk = deformable_groups * K
    if L == 3:
        # PyTorch code has no length-3 branch; treat temp as the full offset.
        assert temp.shape[1] == 3 * dgk, temp.shape
        return temp
    assert temp.shape[1] == L * dgk, (temp.shape, L, dgk)
    t = temp.reshape(n, dgk, L, *sp)
    zero = jnp.zeros((n, dgk, 1) + sp, temp.dtype)
    parts, j = [], 0
    for p in present:
        if p:
            parts.append(t[:, :, j:j + 1]); j += 1
        else:
            parts.append(zero)
    off = jnp.concatenate(parts, axis=2)
    return off.reshape(n, dgk * 3, *sp)


class DeformConvDPallas:
    """JAX/Pallas equivalent of DeformConv_d (forward pass only)."""

    def __init__(self, in_channels, out_channels, kernel_size, stride, padding,
                 dimension="THW", dilation=1, groups=1, deformable_groups=1,
                 im2col_step=64, bias=True, key=None):
        if in_channels % groups != 0:
            raise ValueError("in_channels must be divisible by groups")
        if out_channels % groups != 0:
            raise ValueError("out_channels must be divisible by groups")
        self.in_channels = in_channels
        self.out_channels = out_channels
        self.kernel_size = _triple(kernel_size)
        self.stride = _triple(stride)
        self.padding = _triple(padding)
        self.dilation = _triple(dilation)
        self.dimension = dimension
        self.length = len(dimension)
        self.groups = groups
        self.deformable_groups = deformable_groups
        self.im2col_step = im2col_step   # CUDA batching knob; no effect here
        self.use_bias = bias

        K = self.kernel_size[0] * self.kernel_size[1] * self.kernel_size[2]
        fan_in = (in_channels // groups) * K
        bound = 1.0 / math.sqrt(fan_in)          # kaiming_uniform_(a=sqrt(5))
        if key is None:
            key = jax.random.PRNGKey(0)
        k1, k2 = jax.random.split(key)
        self.weight = jax.random.uniform(
            k1, (out_channels, in_channels // groups, *self.kernel_size),
            jnp.float32, -bound, bound)
        # PyTorch keeps & adds the bias even when bias=False (it is just frozen).
        self.bias = jax.random.uniform(k2, (out_channels,), jnp.float32,
                                       -bound, bound)

    def __call__(self, x, temp):
        K = self.kernel_size[0] * self.kernel_size[1] * self.kernel_size[2]
        offset = _expand_offset(temp.astype(jnp.float32), self.dimension,
                                self.deformable_groups, K)
        return deform_conv3d(x, offset, self.weight, self.bias, self.stride,
                             self.padding, self.dilation, self.groups,
                             self.deformable_groups)


# ----------------------------------------------------------------------------
# Pure-JAX reference (no Pallas): trilinear sampling via map_coordinates
# ----------------------------------------------------------------------------
def _deform_conv3d_ref(x, offset, weight, bias, stride, padding, dilation,
                       groups, deformable_groups):
    N, C, T, H, W = x.shape
    Cout, Cin_g, KT, KH, KW = weight.shape
    ksize = (KT, KH, KW)
    To, Ho, Wo = _out_spatial((T, H, W), ksize, stride, padding, dilation)
    K = KT * KH * KW
    dg = deformable_groups
    G = groups
    Cout_g = Cout // G
    Cdg = C // dg

    ct, ch, cw = _decode_coords(offset, (To, Ho, Wo), ksize, stride, padding,
                                dilation, dg)                 # (N, dg, K, P)
    ct = jnp.repeat(ct, Cdg, axis=1)                          # (N, C, K, P)
    ch = jnp.repeat(ch, Cdg, axis=1)
    cw = jnp.repeat(cw, Cdg, axis=1)

    def sample(vol, a, b, c):                                 # vol (T,H,W)
        return jndimage.map_coordinates(vol, [a, b, c], order=1,
                                        mode="constant", cval=0.0)

    samp = jax.vmap(jax.vmap(sample))(x, ct, ch, cw)          # (N, C, K, P)
    wr = weight.reshape(G, Cout_g, Cin_g, K)
    outs = []
    for g in range(G):
        cg = samp[:, g * Cin_g:(g + 1) * Cin_g]               # (N, Cin_g, K, P)
        outs.append(jnp.einsum("nckp,ock->nop", cg, wr[g],
                               precision=lax.Precision.HIGHEST))
    out = jnp.concatenate(outs, axis=1) + bias[None, :, None]
    return out.reshape(N, Cout, To, Ho, Wo)


# ----------------------------------------------------------------------------
# demo / self-test
# ----------------------------------------------------------------------------
if __name__ == "__main__":
    key = jax.random.PRNGKey(0)
    kx, ktmp, kp = jax.random.split(key, 3)

    N, Cin, T, H, W = 2, 4, 4, 8, 8
    Cout = 8
    K = 27                                     # 3x3x3 kernel

    mod = DeformConvDPallas(Cin, Cout, kernel_size=3, stride=1, padding=1,
                            dimension="HW", dilation=1, groups=1,
                            deformable_groups=1, bias=True, key=kp)

    x = jax.random.normal(kx, (N, Cin, T, H, W), jnp.float32)
    # reduced offsets: only H and W deform (dimension='HW') -> 2*dg*K channels
    temp = 0.8 * jax.random.normal(ktmp, (N, 2 * K, T, H, W), jnp.float32)

    fwd = jax.jit(lambda a, b: mod(a, b))
    y = fwd(x, temp)
    jax.block_until_ready(y)
    assert y.shape == (N, Cout, T, H, W), y.shape
    assert bool(jnp.all(jnp.isfinite(y)))

    # Check 1: zero offsets -> must equal a dense Conv3d with the same weights.
    y0 = fwd(x, jnp.zeros_like(temp))
    ref0 = lax.conv_general_dilated(
        x, mod.weight, window_strides=(1, 1, 1), padding=[(1, 1)] * 3,
        dimension_numbers=("NCDHW", "OIDHW", "NCDHW"),
        precision=lax.Precision.HIGHEST)
    ref0 = ref0 + mod.bias.reshape(1, Cout, 1, 1, 1)
    err0 = float(jnp.max(jnp.abs(y0 - ref0)))
    assert jnp.allclose(y0, ref0, atol=2e-2, rtol=2e-2), err0

    # Check 2: non-zero offsets -> pure-JAX trilinear (map_coordinates) reference.
    offset_full = _expand_offset(temp, "HW", 1, K)
    ref1 = _deform_conv3d_ref(x, offset_full, mod.weight, mod.bias,
                              (1, 1, 1), (1, 1, 1), (1, 1, 1), 1, 1)
    err1 = float(jnp.max(jnp.abs(y - ref1)))
    assert jnp.allclose(y, ref1, atol=2e-2, rtol=2e-2), err1

    print("KERNEL_OK")
</pallas_src>

<mosaic_0001>
module attributes {stable_mosaic.version = 11 : i64} {
  func.func @_grouped_gemm_bias_kernel(%arg0: i32, %arg1: i32, %arg2: i32, %arg3: memref<1x1x108x256xbf16, #tpu.memory_space<vmem>>, %arg4: memref<1x8x108xbf16, #tpu.memory_space<vmem>>, %arg5: memref<1x8x1xf32, #tpu.memory_space<vmem>>, %arg6: memref<1x1x8x256xf32, #tpu.memory_space<vmem>>) attributes {dimension_semantics = [#tpu.dimension_semantics<parallel>, #tpu.dimension_semantics<parallel>, #tpu.dimension_semantics<parallel>], iteration_bounds = array<i64: 1, 2, 1>, scalar_prefetch = 0 : i64, scratch_operands = 0 : i64, tpu.core_type = #tpu.core_type<tc>, window_params = [{transform_indices = @transform_0, window_bounds = array<i64: 1, 1, 108, 256>}, {transform_indices = @transform_1, window_bounds = array<i64: 1, 8, 108>}, {transform_indices = @transform_2, window_bounds = array<i64: 1, 8, 1>}, {transform_indices = @transform_3, window_bounds = array<i64: 1, 1, 8, 256>}]} {
    %c0 = arith.constant 0 : index
    %c0_0 = arith.constant 0 : index
    %c0_1 = arith.constant 0 : index
    %c0_2 = arith.constant 0 : index
    %0 = vector.load %arg3[%c0, %c0_0, %c0_1, %c0_2] : memref<1x1x108x256xbf16, #tpu.memory_space<vmem>>, vector<1x1x108x256xbf16>
    %1 = vector.shape_cast %0 : vector<1x1x108x256xbf16> to vector<108x256xbf16>
    %c0_3 = arith.constant 0 : index
    %c0_4 = arith.constant 0 : index
    %c0_5 = arith.constant 0 : index
    %2 = vector.load %arg4[%c0_3, %c0_4, %c0_5] : memref<1x8x108xbf16, #tpu.memory_space<vmem>>, vector<1x8x108xbf16>
    %3 = vector.shape_cast %2 : vector<1x8x108xbf16> to vector<8x108xbf16>
    %cst = arith.constant dense<0.000000e+00> : vector<8x256xf32>
    %4 = tpu.matmul %3, %1, %cst {dimension_numbers = #tpu.dot_dimension_numbers<[1], [0], [0], [1], [0, 0, 1, 1], [], []>} : vector<8x108xbf16>, vector<108x256xbf16>, vector<8x256xf32> -> vector<8x256xf32>
    %c0_6 = arith.constant 0 : index
    %c0_7 = arith.constant 0 : index
    %c0_8 = arith.constant 0 : index
    %5 = vector.load %arg5[%c0_6, %c0_7, %c0_8] : memref<1x8x1xf32, #tpu.memory_space<vmem>>, vector<1x8x1xf32>
    %6 = vector.shape_cast %5 : vector<1x8x1xf32> to vector<8x1xf32>
    %7 = vector.broadcast %6 : vector<8x1xf32> to vector<8x256xf32>
    %8 = arith.addf %4, %7 : vector<8x256xf32>
    %c0_9 = arith.constant 0 : index
    %c0_10 = arith.constant 0 : index
    %c0_11 = arith.constant 0 : index
    %c0_12 = arith.constant 0 : index
    %9 = vector.load %arg6[%c0_9, %c0_10, %c0_11, %c0_12] : memref<1x1x8x256xf32, #tpu.memory_space<vmem>>, vector<1x1x8x256xf32>
    %10 = vector.shape_cast %9 : vector<1x1x8x256xf32> to vector<8x256xf32>
    %11 = vector.shape_cast %8 : vector<8x256xf32> to vector<1x1x8x256xf32>
    tpu.vector_store %arg6[%c0_9, %c0_10, %c0_11, %c0_12], %11 {strides = array<i32>} : memref<1x1x8x256xf32, #tpu.memory_space<vmem>>, vector<1x1x8x256xf32>,
    return
  }
  func.func @transform_0(%arg0: i32, %arg1: i32, %arg2: i32) -> (i32, i32, i32, i32) {
    %c0_i32 = arith.constant 0 : i32
    %c0_i32_0 = arith.constant 0 : i32
    return %arg1, %arg0, %c0_i32, %arg2 : i32, i32, i32, i32
  }
  func.func @transform_1(%arg0: i32, %arg1: i32, %arg2: i32) -> (i32, i32, i32) {
    %c0_i32 = arith.constant 0 : i32
    %c0_i32_0 = arith.constant 0 : i32
    %c0_i32_1 = arith.constant 0 : i32
    return %arg0, %c0_i32, %c0_i32_0 : i32, i32, i32
  }
  func.func @transform_2(%arg0: i32, %arg1: i32, %arg2: i32) -> (i32, i32, i32) {
    %c0_i32 = arith.constant 0 : i32
    %c0_i32_0 = arith.constant 0 : i32
    %c0_i32_1 = arith.constant 0 : i32
    return %arg0, %c0_i32, %c0_i32_0 : i32, i32, i32
  }
  func.func @transform_3(%arg0: i32, %arg1: i32, %arg2: i32) -> (i32, i32, i32, i32) {
    %c0_i32 = arith.constant 0 : i32
    %c0_i32_0 = arith.constant 0 : i32
    return %arg1, %arg0, %c0_i32, %arg2 : i32, i32, i32, i32
  }
}

</mosaic_0001>

<llo_original>
// kernel: _lambda_.1
$region0: #{_lambda_.1}
  #allocation0 [shape = 'u32[]', space=smem, size = 0x4, offset = 0x4, fixed_abs, tag = 'smem constant byte address 0x4 - core index']
  #allocation1 [shape = 'u32[144,128]{1,0:T(1,128)}', space=vmem, size = 0x12000, scoped, tag = 'internal scratch']
  %s0 = inlined_call_operand.vmem [shape: bf16[2,1,108,256], index: 0, kind: input, shape index: {}]
  %s1 = inlined_call_operand.vmem [shape: bf16[1,8,108], index: 1, kind: input, shape index: {}]
  %s2 = inlined_call_operand.vmem [shape: f32[1,8,1], index: 2, kind: input, shape index: {}]
  %s3 = inlined_call_operand.vmem [shape: f32[2,1,8,256], index: 3, kind: output, shape index: {}]
  %s4 = sld [smem:[#allocation0]]
  $region45: #{_lambda_.1} parent=0
    _
  %s6 = ssub.s32 1, %s4
  %s7 = scalar_select 0, %s6, %s4
  loop: start=0, step=1, limit=4
  $region2: #{_lambda_.1} parent=0 // loop_pre_header
    _
  $region3: #{_lambda_.1} parent=0 // loop_header
    %s9 = sphi 0, %s13
    %p10 = scmp.ge.s32.totalorder %s9, 4
    %s16 = sphi 0, %s35
    %s17 = sphi 0, %s31
    %s18 = sphi 0, %s27
    %s19 = sphi 0, %s16
    %s20 = sphi 0, %s17
    %s21 = sphi 0, %s18
    %s22 = sphi 0, %s19
    %s23 = sphi 0, %s20
    %s24 = sphi 0, %s21
    %s42 = sphi 0, %s44
    %s45 = sphi 0, %s42
    %s46 = sphi 0, %s45
    %s62 = sphi 0, %s46
    %s68 = sphi 0, %s70
    %s71 = sphi 0, %s68
    %s72 = sphi 0, %s71
    %s88 = sphi 0, %s72
    %s94 = sphi 0, %s96
    %s97 = sphi 0, %s94
    %s98 = sphi 0, %s97
    %s114 = sphi 0, %s98
    %s124 = sphi 0, %s126
    %s127 = sphi 0, %s124
    %s128 = sphi 0, %s127
    %s144 = sphi 0, %s128
  $region4: #{_lambda_.1} parent=0 // loop_header_branch
    %12 = sbr.rel (%p10) target = $region8
  $region5: #{_lambda_.1} parent=0 // loop_body
    %s14 = ssub.s32 %s9, 1
    %s15 = ssub.s32 %s9, 2
    %s25 = sadd.s32 1, %s18
    %p26 = scmp.ge.s32.totalorder %s25, 1
    %s27 = scalar_select %p26, 0, %s25
    %s28 = sadd.s32 1, %s17
    %s29 = scalar_select %p26, %s28, %s17
    %p30 = scmp.ge.s32.totalorder %s29, 2
    %s31 = scalar_select %p30, 0, %s29
    %s32 = sadd.s32 1, %s16
    %s33 = scalar_select %p30, %s32, %s16
    %p34 = scmp.ge.s32.totalorder %s33, 1
    %s35 = scalar_select %p34, 0, %s33
    %s36 = ssub.s32 %s17, %s31
    %s37 = ssub.s32 %s16, %s35
    %s38 = sor.u32 %s36, %s37
    %s39 = ssub.s32 %s18, %s27
    %s40 = sor.u32 %s38, %s39
    %p41 = scmp.eq.s32.totalorder %s40, 0
    %s43 = sadd.s32 %s42, 1
    %s44 = scalar_select %p41, %s42, %s43
    %p47 = pneg %p41
    %p48 = scmp.eq.s32.totalorder %s9, 1
    %p49 = por %p47, %p48
    %p50 = scmp.ne.s32.totalorder %s42, %s45
    %p51 = scmp.eq.s32.totalorder %s9, 0
    %p52 = por %p50, %p51
    %p53 = scmp.ne.s32.totalorder %s42, %s45
    %p54 = scmp.eq.s32.totalorder %s14, 1
    %p55 = por %p53, %p54
    %p56 = scmp.ne.s32.totalorder %s45, %s46
    %p57 = scmp.eq.s32.totalorder %s14, 0
    %p58 = por %p56, %p57
    %p59 = scmp.ne.s32.totalorder %s45, %s46
    %p60 = scmp.eq.s32.totalorder %s15, 1
    %p61 = por %p59, %p60
    %p63 = scmp.ne.s32.totalorder %s46, %s62
    %p64 = scmp.eq.s32.totalorder %s15, 0
    %p65 = por %p63, %p64
    %s66 = ssub.s32 %s16, %s35
    %p67 = scmp.eq.s32.totalorder %s66, 0
    %s69 = sadd.s32 %s68, 1
    %s70 = scalar_select %p67, %s68, %s69
    %p73 = pneg %p67
    %p74 = scmp.eq.s32.totalorder %s9, 1
    %p75 = por %p73, %p74
    %p76 = scmp.ne.s32.totalorder %s68, %s71
    %p77 = scmp.eq.s32.totalorder %s9, 0
    %p78 = por %p76, %p77
    %p79 = scmp.ne.s32.totalorder %s68, %s71
    %p80 = scmp.eq.s32.totalorder %s14, 1
    %p81 = por %p79, %p80
    %p82 = scmp.ne.s32.totalorder %s71, %s72
    %p83 = scmp.eq.s32.totalorder %s14, 0
    %p84 = por %p82, %p83
    %p85 = scmp.ne.s32.totalorder %s71, %s72
    %p86 = scmp.eq.s32.totalorder %s15, 1
    %p87 = por %p85, %p86
    %p89 = scmp.ne.s32.totalorder %s72, %s88
    %p90 = scmp.eq.s32.totalorder %s15, 0
    %p91 = por %p89, %p90
    %s92 = ssub.s32 %s16, %s35
    %p93 = scmp.eq.s32.totalorder %s92, 0
    %s95 = sadd.s32 %s94, 1
    %s96 = scalar_select %p93, %s94, %s95
    %p99 = pneg %p93
    %p100 = scmp.eq.s32.totalorder %s9, 1
    %p101 = por %p99, %p100
    %p102 = scmp.ne.s32.totalorder %s94, %s97
    %p103 = scmp.eq.s32.totalorder %s9, 0
    %p104 = por %p102, %p103
    %p105 = scmp.ne.s32.totalorder %s94, %s97
    %p106 = scmp.eq.s32.totalorder %s14, 1
    %p107 = por %p105, %p106
    %p108 = scmp.ne.s32.totalorder %s97, %s98
    %p109 = scmp.eq.s32.totalorder %s14, 0
    %p110 = por %p108, %p109
    %p111 = scmp.ne.s32.totalorder %s97, %s98
    %p112 = scmp.eq.s32.totalorder %s15, 1
    %p113 = por %p111, %p112
    %p115 = scmp.ne.s32.totalorder %s98, %s114
    %p116 = scmp.eq.s32.totalorder %s15, 0
    %p117 = por %p115, %p116
    %s118 = ssub.s32 %s17, %s31
    %s119 = ssub.s32 %s16, %s35
    %s120 = sor.u32 %s118, %s119
    %s121 = ssub.s32 %s18, %s27
    %s122 = sor.u32 %s120, %s121
    %p123 = scmp.eq.s32.totalorder %s122, 0
    %s125 = sadd.s32 %s124, 1
    %s126 = scalar_select %p123, %s124, %s125
    %p129 = pneg %p123
    %p130 = scmp.eq.s32.totalorder %s9, 1
    %p131 = por %p129, %p130
    %p132 = scmp.ne.s32.totalorder %s124, %s127
    %p133 = scmp.eq.s32.totalorder %s9, 0
    %p134 = por %p132, %p133
    %p135 = scmp.ne.s32.totalorder %s124, %s127
    %p136 = scmp.eq.s32.totalorder %s14, 1
    %p137 = por %p135, %p136
    %p138 = scmp.ne.s32.totalorder %s127, %s128
    %p139 = scmp.eq.s32.totalorder %s14, 0
    %p140 = por %p138, %p139
    %p141 = scmp.ne.s32.totalorder %s127, %s128
    %p142 = scmp.eq.s32.totalorder %s15, 1
    %p143 = por %p141, %p142
    %p145 = scmp.ne.s32.totalorder %s128, %s144
    %p146 = scmp.eq.s32.totalorder %s15, 0
    %p147 = por %p145, %p146
    %p148 = scmp.le.s32.totalorder 1, %s9
    %p149 = scmp.lt.s32.totalorder %s9, 3
    %p150 = pnand %p148, %p149
    %p151 = pneg %p150
    // Predicated region
    $region9: #{_lambda_.1} parent=5 // pred_check
      _
    $region10: #{_lambda_.1} parent=5 // pred_check_branch
      %153 = sbr.rel (%p150) target = $region12
    $region11: #{_lambda_.1} parent=5 // pred_region
      %s154 = ssub.s32 %s9, 1
      // Predicated region
      $region13: #{_lambda_.1} parent=11 // pred_check
        %p155 = pneg %p84
      $region14: #{_lambda_.1} parent=11 // pred_check_branch
        %157 = sbr.rel (%p155) target = $region16
      $region15: #{_lambda_.1} parent=11 // pred_region
        %p158 = scmp.lt.s32.totalorder %s19, 0
        %s159 = scalar_select %p158, %s19, 0
        %s160 = smul.addr %s159, 4
        %s161 = scalar_lea.vmem %s1, %s160
      $region16: #{_lambda_.1} parent=11 // pred_fallthru
        _
      // Predicated region
      $region17: #{_lambda_.1} parent=11 // pred_check
        %p162 = pneg %p110
      $region18: #{_lambda_.1} parent=11 // pred_check_branch
        %164 = sbr.rel (%p162) target = $region20
      $region19: #{_lambda_.1} parent=11 // pred_region
        %p165 = scmp.lt.s32.totalorder %s19, 0
        %s166 = scalar_select %p165, %s19, 0
        %s167 = smul.addr %s166, 8
        %s168 = scalar_lea.vmem %s2, %s167
      $region20: #{_lambda_.1} parent=11 // pred_fallthru
        _
    $region12: #{_lambda_.1} parent=5 // pred_fallthru
      _
    %p169 = scmp.lt.s32.totalorder %s9, 2
    // Predicated region
    $region21: #{_lambda_.1} parent=5 // pred_check
      %p170 = pneg %p169
    $region22: #{_lambda_.1} parent=5 // pred_check_branch
      %172 = sbr.rel (%p170) target = $region24
    $region23: #{_lambda_.1} parent=5 // pred_region
      // Predicated region
      $region25: #{_lambda_.1} parent=23 // pred_check
        %p173 = pneg %p52
      $region26: #{_lambda_.1} parent=23 // pred_check_branch
        %175 = sbr.rel (%p173) target = $region28
      $region27: #{_lambda_.1} parent=23 // pred_region
        %s176 = smul.u32 2, %s18
        %p177 = scmp.lt.s32.totalorder %s17, 1
        %s178 = scalar_select %p177, %s17, 1
        %p179 = scmp.lt.s32.totalorder %s16, 0
        %s180 = scalar_select %p179, %s16, 0
        %p181 = scmp.lt.s32.totalorder %s176, 1
        %s182 = scalar_select %p181, %s176, 1
        %s183 = smul.addr %s180, 28
        %s184 = sadd.s32 %s182, %s183
        %s185 = smul.addr %s178, 28
        %s186 = sadd.s32 %s184, %s185
        %s187 = smul.addr %s186, 4
        %s188 = scalar_lea.vmem %s0, %s187
        %s189 = smul.u32 2, %s18
      $region28: #{_lambda_.1} parent=23 // pred_fallthru
        _
    $region24: #{_lambda_.1} parent=5 // pred_fallthru
      _
    %p190 = scmp.le.s32.totalorder 1, %s9
    %p191 = scmp.lt.s32.totalorder %s9, 3
    %p192 = pnand %p190, %p191
    %p193 = pneg %p192
    // Predicated region
    $region29: #{_lambda_.1} parent=5 // pred_check
      _
    $region30: #{_lambda_.1} parent=5 // pred_check_branch
      %195 = sbr.rel (%p192) target = $region32
    $region31: #{_lambda_.1} parent=5 // pred_region
      %s196 = ssub.s32 %s9, 1
      %s197 = smul.u32 2, %s21
      %p198 = scmp.lt.s32.totalorder %s20, 1
      %s199 = scalar_select %p198, %s20, 1
      %p200 = scmp.lt.s32.totalorder %s19, 0
      %s201 = scalar_select %p200, %s19, 0
      %p202 = scmp.lt.s32.totalorder %s197, 1
      %s203 = scalar_select %p202, %s197, 1
      %s204 = smul.addr %s201, 28
      %s205 = sadd.s32 %s203, %s204
      %s206 = smul.addr %s199, 28
      %s207 = sadd.s32 %s205, %s206
      %s208 = smul.addr %s207, 4
      %s209 = scalar_lea.vmem %s0, %s208
      %p210 = pneg %p58
      %p211 = pneg %p55
      %p212 = scmp.lt.s32.totalorder %s19, 0
      %s213 = scalar_select %p212, %s19, 0
      %s214 = smul.addr %s213, 4
      %s215 = scalar_lea.vmem %s1, %s214
      %p216 = pneg %p84
      %p217 = pneg %p81
      %p218 = scmp.lt.s32.totalorder %s19, 0
      %s219 = scalar_select %p218, %s19, 0
      %s220 = smul.addr %s219, 8
      %s221 = scalar_lea.vmem %s2, %s220
      %p222 = pneg %p110
      %p223 = pneg %p107
      %p224 = pneg %p140
      %p225 = pneg %p137
      %s226 = smul.u32 2, %s21
      %p227 = scmp.lt.s32.totalorder %s20, 1
      %s228 = scalar_select %p227, %s20, 1
      %p229 = scmp.lt.s32.totalorder %s19, 0
      %s230 = scalar_select %p229, %s19, 0
      %p231 = scmp.lt.s32.totalorder %s226, 1
      %s232 = scalar_select %p231, %s226, 1
      %s233 = smul.addr %s230, 2
      %s234 = sadd.s32 %s232, %s233
      %s235 = smul.addr %s228, 2
      %s236 = sadd.s32 %s234, %s235
      %s237 = smul.addr %s236, 8
      %s238 = scalar_lea.vmem %s3, %s237
      %s239 = smul.u32 2, %s21
      %p240 = scmp.lt.s32.totalorder %s20, 1
      %s241 = scalar_select %p240, %s20, 1
      %p242 = scmp.lt.s32.totalorder %s19, 0
      %s243 = scalar_select %p242, %s19, 0
      %p244 = scmp.lt.s32.totalorder %s239, 1
      %s245 = scalar_select %p244, %s239, 1
      %s246 = smul.addr %s243, 28
      %s247 = sadd.s32 %s245, %s246
      %s248 = smul.addr %s241, 28
      %s249 = sadd.s32 %s247, %s248
      %s250 = smul.addr %s249, 4
      %s251 = scalar_lea.vmem %s0, %s250
      %s252 = smul.u32 2, %s21
      %p253 = scmp.lt.s32.totalorder %s19, 0
      %s254 = scalar_select %p253, %s19, 0
      %s255 = smul.addr %s254, 4
      %s256 = scalar_lea.vmem %s1, %s255
      %p257 = scmp.lt.s32.totalorder %s19, 0
      %s258 = scalar_select %p257, %s19, 0
      %s259 = smul.addr %s258, 8
      %s260 = scalar_lea.vmem %s2, %s259
      %s261 = smul.u32 2, %s21
      %p262 = scmp.lt.s32.totalorder %s20, 1
      %s263 = scalar_select %p262, %s20, 1
      %p264 = scmp.lt.s32.totalorder %s19, 0
      %s265 = scalar_select %p264, %s19, 0
      %p266 = scmp.lt.s32.totalorder %s261, 1
      %s267 = scalar_select %p266, %s261, 1
      %s268 = smul.addr %s265, 2
      %s269 = sadd.s32 %s267, %s268
      %s270 = smul.addr %s263, 2
      %s271 = sadd.s32 %s269, %s270
      %s272 = smul.addr %s271, 8
      %s273 = scalar_lea.vmem %s3, %s272
      %s274 = smul.u32 2, %s21
      %v276 = vld [vmem:[%s251] sm:$0xff]
      %v277 = vld [vmem:[%s251 + $0x8] sm:$0xff]
      %v278 = vld [vmem:[%s251 + $0x10] sm:$0xff]
      %v279 = vld [vmem:[%s251 + $0x18] sm:$0xff]
      %v280 = vld [vmem:[%s251 + $0x20] sm:$0xff]
      %v281 = vld [vmem:[%s251 + $0x28] sm:$0xff]
      %v282 = vld [vmem:[%s251 + $0x30] sm:$0xff]
      %v283 = vld [vmem:[%s251 + $0x38] sm:$0xff]
      %v284 = vld [vmem:[%s251 + $0x40] sm:$0xff]
      %v285 = vld [vmem:[%s251 + $0x48] sm:$0xff]
      %v286 = vld [vmem:[%s251 + $0x50] sm:$0xff]
      %v287 = vld [vmem:[%s251 + $0x58] sm:$0xff]
      %v288 = vld [vmem:[%s251 + $0x60] sm:$0xff]
      %v289 = vld [vmem:[%s251 + $0x68] sm:$0x33]
      %v290 = vld [vmem:[%s256] sm:$0xf]
      %v291 = vld [vmem:[%s260] sm:$0xff]
      %293 = vset.pattern.permute.xlu0 0
      %294 = vperm.xlu0 %293, %v291
      %v295 = vpop.permute.xlu0 %294
      %v311 = vunpack.c.l.b16 %v276
      %v312 = vunpack.c.h.b16 %v276
      %v313 = vunpack.c.l.b16 %v277
      %v314 = vunpack.c.h.b16 %v277
      %v315 = vunpack.c.l.b16 %v278
      %v316 = vunpack.c.h.b16 %v278
      %v317 = vunpack.c.l.b16 %v279
      %v318 = vunpack.c.h.b16 %v279
      %v319 = vunpack.c.l.b16 %v280
      %v320 = vunpack.c.h.b16 %v280
      %v321 = vunpack.c.l.b16 %v281
      %v322 = vunpack.c.h.b16 %v281
      %v323 = vunpack.c.l.b16 %v282
      %v324 = vunpack.c.h.b16 %v282
      %v325 = vunpack.c.l.b16 %v283
      %v326 = vunpack.c.h.b16 %v283
      %v327 = vunpack.c.l.b16 %v284
      %v328 = vunpack.c.h.b16 %v284
      %v329 = vunpack.c.l.b16 %v285
      %v330 = vunpack.c.h.b16 %v285
      %v331 = vunpack.c.l.b16 %v286
      %v332 = vunpack.c.h.b16 %v286
      %v333 = vunpack.c.l.b16 %v287
      %v334 = vunpack.c.h.b16 %v287
      %v335 = vunpack.c.l.b16 %v288
      %v336 = vunpack.c.h.b16 %v288
      %v337 = vunpack.c.l.b16 %v289
      %v338 = vunpack.c.h.b16 %v289
      %v339 = vpack.c.b16 %v313, %v311
      %v340 = vpack.c.b16 %v314, %v312
      %v341 = vpack.c.b16 %v317, %v315
      %v342 = vpack.c.b16 %v318, %v316
      %v343 = vpack.c.b16 %v321, %v319
      %v344 = vpack.c.b16 %v322, %v320
      %v345 = vpack.c.b16 %v325, %v323
      %v346 = vpack.c.b16 %v326, %v324
      %v347 = vpack.c.b16 %v329, %v327
      %v348 = vpack.c.b16 %v330, %v328
      %v349 = vpack.c.b16 %v333, %v331
      %v350 = vpack.c.b16 %v334, %v332
      %v351 = vpack.c.b16 %v337, %v335
      %v352 = vpack.c.b16 %v338, %v336
      %vm365 = vcmask 883712
      %v367 = vsel %vm365, %v290, 0
      %vm369 = vcmask 1045504
      %v371 = vsel %vm369, %v351, 0
      %v374 = vsel %vm369, %v352, 0
      %376 = vmatprep.subr.bf16.mxu0 %v340
      %377 = vmatpush1.bf16.msra.mxu0 %v339
      %378 = vmatprep.subr.bf16.mxu0 %v342
      %379 = vmatpush1.bf16.msra.mxu0 %v341
      %380 = vmatprep.subr.bf16.mxu0 %v344
      %381 = vmatpush1.bf16.msra.mxu0 %v343
      %382 = vmatprep.subr.bf16.mxu0 %v346
      %383 = vmatpush1.bf16.msra.mxu0 %v345
      %384 = vmatprep.subr.bf16.mxu0 %v348
      %385 = vmatpush1.bf16.msra.mxu0 %v347
      %386 = vmatprep.subr.bf16.mxu0 %v350
      %387 = vmatpush1.bf16.msra.mxu0 %v349
      %388 = vmatprep.subr.bf16.mxu0 %v374
      %389 = vmatpush1.bf16.msra.mxu0 %v371
      %390 = vmatprep.subr.bf16.mxu0 0
      %391 = vmatpush1.bf16.msra.mxu0 0
      %392 = vmatprep.subr.bf16.mxu0 0
      %393 = vmatpush1.bf16.msra.mxu0 0
      %394 = vmatprep.subr.bf16.mxu0 0
      %395 = vmatpush1.bf16.msra.mxu0 0
      %396 = vmatprep.subr.bf16.mxu0 0
      %397 = vmatpush1.bf16.msra.mxu0 0
      %398 = vmatprep.subr.bf16.mxu0 0
      %399 = vmatpush1.bf16.msra.mxu0 0
      %400 = vmatprep.subr.bf16.mxu0 0
      %401 = vmatpush1.bf16.msra.mxu0 0
      %402 = vmatprep.subr.bf16.mxu0 0
      %403 = vmatpush1.bf16.msra.mxu0 0
      %404 = vmatprep.subr.bf16.mxu0 0
      %405 = vmatpush1.bf16.msra.mxu0 0
      %406 = vmatprep.subr.bf16.mxu0 0
      %407 = vmatpush1.bf16.msra.mxu0 0
      %408 = vmatprep.mubr.bf16.mxu0 0
      %409 = vmatmul.mubr.bf16.gmra.mrb[0].mxu0 %v367
      %v410 = vpop.f32.mrb[0].mxu0
      %v411 = vadd.f32 %v295, %v410
      %v412 = vpop.f32.mrb[0].mxu0
      %v413 = vadd.f32 %v295, %v412
      %v414 = vpop.f32.mrb[0].mxu0
      %v415 = vpop.f32.mrb[0].mxu0
      %416 = vdwg.mxu0
      %417 = vst [vmem:[%s273] sm:$0xff] %v411
      %418 = vst [vmem:[%s273 + $0x8] sm:$0xff] %v413
      %s419 = smul.u32 2, %s21
      %p420 = scmp.lt.s32.totalorder %s20, 1
      %s421 = scalar_select %p420, %s20, 1
      %p422 = scmp.lt.s32.totalorder %s19, 0
      %s423 = scalar_select %p422, %s19, 0
      %p424 = scmp.lt.s32.totalorder %s419, 1
      %s425 = scalar_select %p424, %s419, 1
      %s426 = smul.addr %s423, 2
      %s427 = sadd.s32 %s425, %s426
      %s428 = smul.addr %s421, 2
      %s429 = sadd.s32 %s427, %s428
      %s430 = smul.addr %s429, 8
      %s431 = scalar_lea.vmem %s3, %s430
      // Predicated region
      $region33: #{_lambda_.1} parent=31 // pred_check
        %p432 = pneg %p137
      $region34: #{_lambda_.1} parent=31 // pred_check_branch
        %434 = sbr.rel (%p432) target = $region36
      $region35: #{_lambda_.1} parent=31 // pred_region
        %s435 = smul.u32 2, %s21
      $region36: #{_lambda_.1} parent=31 // pred_fallthru
        _
    $region32: #{_lambda_.1} parent=5 // pred_fallthru
      _
    %p436 = scmp.le.s32.totalorder 2, %s9
    // Predicated region
    $region37: #{_lambda_.1} parent=5 // pred_check
      %p437 = pneg %p436
    $region38: #{_lambda_.1} parent=5 // pred_check_branch
      %439 = sbr.rel (%p437) target = $region40
    $region39: #{_lambda_.1} parent=5 // pred_region
      %s440 = ssub.s32 %s9, 2
      // Predicated region
      $region41: #{_lambda_.1} parent=39 // pred_check
        %p441 = pneg %p143
      $region42: #{_lambda_.1} parent=39 // pred_check_branch
        %443 = sbr.rel (%p441) target = $region44
      $region43: #{_lambda_.1} parent=39 // pred_region
        %s444 = smul.u32 2, %s24
        %p445 = scmp.lt.s32.totalorder %s23, 1
        %s446 = scalar_select %p445, %s23, 1
        %p447 = scmp.lt.s32.totalorder %s22, 0
        %s448 = scalar_select %p447, %s22, 0
        %p449 = scmp.lt.s32.totalorder %s444, 1
        %s450 = scalar_select %p449, %s444, 1
        %s451 = smul.addr %s448, 2
        %s452 = sadd.s32 %s450, %s451
        %s453 = smul.addr %s446, 2
        %s454 = sadd.s32 %s452, %s453
        %s455 = smul.addr %s454, 8
        %s456 = scalar_lea.vmem %s3, %s455
      $region44: #{_lambda_.1} parent=39 // pred_fallthru
        _
    $region40: #{_lambda_.1} parent=5 // pred_fallthru
      _
  $region6: #{_lambda_.1} parent=0 // loop_footer
    %s13 = sadd.s32 1, %s9
  $region7: #{_lambda_.1} parent=0 // loop_footer_branch
    %8 = sbr.rel target = $region3
  $region8: #{_lambda_.1} parent=0 // loop_exit
    _

</llo_original>
